<compile_context>
chip_gen: v7x
topology: tpu7x:2x2x1
jax: 0.10.0
libtpu: 0.0.40
codegen_flags: <defaults>
</compile_context>

<pallas_src>
import functools

import jax
import jax.numpy as jnp
from jax.experimental import pallas as pl
from jax.experimental.pallas import tpu as pltpu


def _gather_rows(ids_ref, table_ref):
    """One-hot MXU gather: rows of `table` at `ids` (good for small V)."""
    ids = ids_ref[...]                                           # (TN, 1) int32
    tn = ids.shape[0]
    v = table_ref.shape[0]
    iota = jax.lax.broadcasted_iota(jnp.int32, (tn, v), 1)       # (TN, V)
    onehot = (iota == ids).astype(table_ref.dtype)               # (TN, V)
    return jnp.dot(onehot, table_ref[...],
                   preferred_element_type=jnp.float32)           # (TN, D) f32


def _embed_kernel(ids_ref, table_ref, out_ref):
    # Eval mode: dropout is identity (nn.Dropout.eval()).
    out_ref[...] = _gather_rows(ids_ref, table_ref).astype(out_ref.dtype)


def _embed_dropout_kernel(ids_ref, table_ref, bits_ref, out_ref, *,
                          dropout_rate: float):
    emb = _gather_rows(ids_ref, table_ref)
    # Inverted dropout via integer threshold on uint32 random bits:
    # keep with prob (1-p) and scale by 1/(1-p), matching nn.Dropout(train).
    thresh = jnp.uint32(min(int(dropout_rate * float(2 ** 32)), 2 ** 32 - 1))
    inv_keep = jnp.float32(1.0 / (1.0 - dropout_rate))
    keep_scale = jnp.where(bits_ref[...] >= thresh, inv_keep, jnp.float32(0.0))
    out_ref[...] = (emb * keep_scale).astype(out_ref.dtype)


def _round_up(x: int, m: int) -> int:
    return ((x + m - 1) // m) * m


def subtoken_unit_embedder(token_idxs, embedding_table, *,
                           dropout_rate: float = 0.1,
                           training: bool = False,
                           rng_key=None,
                           block_n_max: int = 512):
    """token_idxs: [S, B] int32; embedding_table: [V, D] float32.

    Returns [S, B, D] float32, matching the PyTorch forward pass.
    """
    S, B = token_idxs.shape
    V, D = embedding_table.shape
    N = S * B

    # Tile sizing: one grid step for tiny N; otherwise large sublane-aligned
    # tiles (big tiles amortize per-step overhead and fill the MXU).
    block_n = min(int(block_n_max), _round_up(N, 8))
    block_n = _round_up(block_n, 8)
    n_pad = _round_up(N, block_n)

    ids = token_idxs.reshape(N, 1).astype(jnp.int32)
    if n_pad != N:
        ids = jnp.pad(ids, ((0, n_pad - N), (0, 0)))

    use_dropout = bool(training) and float(dropout_rate) > 0.0

    grid = (n_pad // block_n,)
    ids_spec = pl.BlockSpec((block_n, 1), lambda i: (i, 0))
    # Constant-index spec: whole table resident in VMEM (V*D*4 B is tiny here).
    # TODO(synk): for large vocabularies (> ~2K rows) switch to a scalar-prefetch
    # / DMA row-gather so the table stays in HBM (matters under v7x's 64 MiB VMEM).
    table_spec = pl.BlockSpec((V, D), lambda i: (0, 0))
    out_spec = pl.BlockSpec((block_n, D), lambda i: (i, 0))

    if use_dropout:
        if rng_key is None:
            rng_key = jax.random.PRNGKey(0)
        # Random bits generated outside the kernel: portable (runs on real TPU
        # and under the Pallas interpreter, unlike the in-kernel pltpu.prng_*).
        bits = jax.random.bits(rng_key, (n_pad, D), dtype=jnp.uint32)
        kernel = functools.partial(_embed_dropout_kernel,
                                   dropout_rate=float(dropout_rate))
        in_specs = [ids_spec, table_spec,
                    pl.BlockSpec((block_n, D), lambda i: (i, 0))]
        args = (ids, embedding_table, bits)
    else:
        kernel = _embed_kernel
        in_specs = [ids_spec, table_spec]
        args = (ids, embedding_table)

    out_flat = pl.pallas_call(
        kernel,
        out_shape=jax.ShapeDtypeStruct((n_pad, D), embedding_table.dtype),
        grid_spec=pltpu.PrefetchScalarGridSpec(
            num_scalar_prefetch=0,
            grid=grid,
            in_specs=in_specs,
            out_specs=out_spec),
        compiler_params=pltpu.CompilerParams(
            dimension_semantics=("parallel",)),
    )(*args)

    return out_flat[:N].reshape(S, B, D)


if __name__ == "__main__":
    key = jax.random.PRNGKey(0)
    k_tab, k_ids, k_drop = jax.random.split(key, 3)

    vocabulary_size = 128
    embedding_size = 32
    max_num_subtokens = 8
    batch = 2
    dropout_rate = 0.1

    # nn.init.uniform_ -> U[0, 1) init of the embedding weight.
    embedding_table = jax.random.uniform(
        k_tab, (vocabulary_size, embedding_size), dtype=jnp.float32)
    token_idxs = jax.random.randint(
        k_ids, (max_num_subtokens, batch), 0, vocabulary_size, dtype=jnp.int32)

    # Eval-mode forward (dropout = identity) -> must match jnp.take.
    out = subtoken_unit_embedder(token_idxs, embedding_table,
                                 dropout_rate=dropout_rate, training=False)
    out = jax.block_until_ready(out)

    ref = jnp.take(embedding_table, token_idxs, axis=0)   # (S, B, D)
    assert out.shape == (max_num_subtokens, batch, embedding_size)
    assert jnp.allclose(out, ref, atol=1e-6, rtol=1e-6)

    # Training-mode forward: every element is either dropped (0) or scaled by
    # 1/(1-p) — inverted dropout, matching nn.Dropout in train mode.
    out_train = subtoken_unit_embedder(token_idxs, embedding_table,
                                       dropout_rate=dropout_rate,
                                       training=True, rng_key=k_drop)
    out_train = jax.block_until_ready(out_train)
    assert out_train.shape == (max_num_subtokens, batch, embedding_size)
    scaled = ref / (1.0 - dropout_rate)
    ok = (jnp.isclose(out_train, 0.0, atol=1e-6)
          | jnp.isclose(out_train, scaled, atol=1e-5, rtol=1e-5))
    assert bool(jnp.all(ok))

    print("KERNEL_OK")
</pallas_src>

<mosaic_0001>
module attributes {stable_mosaic.version = 11 : i64} {
  func.func @_embed_kernel(%arg0: i32, %arg1: memref<16x1xi32, #tpu.memory_space<vmem>>, %arg2: memref<128x32xf32, #tpu.memory_space<vmem>>, %arg3: memref<16x32xf32, #tpu.memory_space<vmem>>) attributes {dimension_semantics = [#tpu.dimension_semantics<parallel>], iteration_bounds = array<i64: 1>, scalar_prefetch = 0 : i64, scratch_operands = 0 : i64, tpu.core_type = #tpu.core_type<tc>, window_params = [{transform_indices = @transform_0, window_bounds = array<i64: 16, 1>}, {pipeline_mode = #tpu.pipeline_mode<synchronous>, transform_indices = @transform_1, window_bounds = array<i64: 128, 32>}, {transform_indices = @transform_2, window_bounds = array<i64: 16, 32>}]} {
    %c0 = arith.constant 0 : index
    %c0_0 = arith.constant 0 : index
    %0 = vector.load %arg1[%c0, %c0_0] : memref<16x1xi32, #tpu.memory_space<vmem>>, vector<16x1xi32>
    %1 = tpu.iota {dimensions = array<i32: 1>} : vector<16x128xi32>
    %2 = vector.broadcast %0 : vector<16x1xi32> to vector<16x128xi32>
    %3 = arith.cmpi eq, %1, %2 : vector<16x128xi32>
    %4 = arith.extui %3 : vector<16x128xi1> to vector<16x128xi32>
    %5 = arith.sitofp %4 : vector<16x128xi32> to vector<16x128xf32>
    %c0_1 = arith.constant 0 : index
    %c0_2 = arith.constant 0 : index
    %6 = vector.load %arg2[%c0_1, %c0_2] : memref<128x32xf32, #tpu.memory_space<vmem>>, vector<128x32xf32>
    %cst = arith.constant dense<0.000000e+00> : vector<16x32xf32>
    %7 = tpu.matmul %5, %6, %cst {dimension_numbers = #tpu.dot_dimension_numbers<[1], [0], [0], [1], [0, 0, 1, 1], [], []>} : vector<16x128xf32>, vector<128x32xf32>, vector<16x32xf32> -> vector<16x32xf32>
    %c0_3 = arith.constant 0 : index
    %c0_4 = arith.constant 0 : index
    %8 = vector.load %arg3[%c0_3, %c0_4] : memref<16x32xf32, #tpu.memory_space<vmem>>, vector<16x32xf32>
    tpu.vector_store %arg3[%c0_3, %c0_4], %7 {strides = array<i32>} : memref<16x32xf32, #tpu.memory_space<vmem>>, vector<16x32xf32>,
    return
  }
  func.func @transform_0(%arg0: i32) -> (i32, i32) {
    %c0_i32 = arith.constant 0 : i32
    %c0_i32_0 = arith.constant 0 : i32
    return %arg0, %c0_i32 : i32, i32
  }
  func.func @transform_1(%arg0: i32) -> (i32, i32) {
    %c0_i32 = arith.constant 0 : i32
    %c0_i32_0 = arith.constant 0 : i32
    %c0_i32_1 = arith.constant 0 : i32
    return %c0_i32, %c0_i32_0 : i32, i32
  }
  func.func @transform_2(%arg0: i32) -> (i32, i32) {
    %c0_i32 = arith.constant 0 : i32
    %c0_i32_0 = arith.constant 0 : i32
    return %arg0, %c0_i32 : i32, i32
  }
}

</mosaic_0001>

<llo_original>
// kernel: tpu_custom_call.1
$region0: #{tpu_custom_call.1}
  #allocation0 [shape = 'u32[]', space=smem, size = 0x4, offset = 0x4, fixed_abs, tag = 'smem constant byte address 0x4 - core index']
  #allocation1 [shape = 'u32[144,128]{1,0:T(1,128)}', space=vmem, size = 0x12000, scoped, tag = 'internal scratch']
  %s0 = inlined_call_operand.vmem [shape: s32[16,1], index: 0, kind: input, shape index: {}]
  %s1 = inlined_call_operand.vmem [shape: f32[128,32], index: 1, kind: input, shape index: {}]
  %s2 = inlined_call_operand.hbm [shape: f32[16,32], index: 2, kind: output, shape index: {}]
  %s3 = sld [smem:[#allocation0]]
  $region18: #{tpu_custom_call.1} parent=0
    _
  %s5 = ssub.s32 1, %s3
  %s6 = scalar_select 0, %s5, %s3
  $region1: #{tpu_custom_call.1} parent=0
    #allocation2 [shape = 'u8[8192]{0}', space=vmem, size = 0x2000, scoped, tag = 'output window, operand 0, single buffered']
    #allocation3 [shape = 's32[1]{0}', space=sflag, size = 0x4, scoped, tag = 'scoped memory for tpu_custom_call.1']
    %7 = vsyncpa [#allocation3], 0
    // Predicated region
    $region2: #{tpu_custom_call.1} parent=1 // pred_check
      _
    $region3: #{tpu_custom_call.1} parent=1 // pred_check_branch
      %9 = sbr.rel (0) target = $region5
    $region4: #{tpu_custom_call.1} parent=1 // pred_region
      _
    $region5: #{tpu_custom_call.1} parent=1 // pred_fallthru
      _
    // Predicated region
    $region6: #{tpu_custom_call.1} parent=1 // pred_check
      _
    $region7: #{tpu_custom_call.1} parent=1 // pred_check_branch
      %11 = sbr.rel (0) target = $region9
    $region8: #{tpu_custom_call.1} parent=1 // pred_region
      _
    $region9: #{tpu_custom_call.1} parent=1 // pred_fallthru
      _
    %v12 = vld [vmem:[%s0] sm:$0xff]
    %v13 = vld [vmem:[%s0 + $0x8] sm:$0xff]
    %v14 = vlaneseq
    %v15 = vand.u32 %v14, 127
    %16 = vset.pattern.permute.xlu0 0
    %17 = vperm.xlu0 %16, %v12
    %v18 = vpop.permute.xlu0 %17
    %19 = vset.pattern.permute.xlu0 0
    %20 = vperm.xlu0 %19, %v13
    %v21 = vpop.permute.xlu0 %20
    %vm22 = vcmp.eq.s32.totalorder %v15, %v18
    %vm23 = vcmp.eq.s32.totalorder %v15, %v21
    %v24 = vsel %vm22, 1, 0
    %v25 = vsel %vm23, 1, 0
    %v26 = vcvt.s32.f32 %v24
    %v27 = vcvt.s32.f32 %v25
    %v28 = vld [vmem:[%s1] sm:$0xff]
    %v29 = vld [vmem:[%s1 + $0x8] sm:$0xff]
    %v30 = vld [vmem:[%s1 + $0x10] sm:$0xff]
    %v31 = vld [vmem:[%s1 + $0x18] sm:$0xff]
    %v32 = vld [vmem:[%s1 + $0x20] sm:$0xff]
    %v33 = vld [vmem:[%s1 + $0x28] sm:$0xff]
    %v34 = vld [vmem:[%s1 + $0x30] sm:$0xff]
    %v35 = vld [vmem:[%s1 + $0x38] sm:$0xff]
    %v36 = vld [vmem:[%s1 + $0x40] sm:$0xff]
    %v37 = vld [vmem:[%s1 + $0x48] sm:$0xff]
    %v38 = vld [vmem:[%s1 + $0x50] sm:$0xff]
    %v39 = vld [vmem:[%s1 + $0x58] sm:$0xff]
    %v40 = vld [vmem:[%s1 + $0x60] sm:$0xff]
    %v41 = vld [vmem:[%s1 + $0x68] sm:$0xff]
    %v42 = vld [vmem:[%s1 + $0x70] sm:$0xff]
    %v43 = vld [vmem:[%s1 + $0x78] sm:$0xff]
    %44 = vmatprep.subr.mxu0 0.0
    %45 = vmatpush1.msra.mxu0 %v28
    %46 = vmatprep.subr.mxu0 0.0
    %47 = vmatpush1.msra.mxu0 %v29
    %48 = vmatprep.subr.mxu0 0.0
    %49 = vmatpush1.msra.mxu0 %v30
    %50 = vmatprep.subr.mxu0 0.0
    %51 = vmatpush1.msra.mxu0 %v31
    %52 = vmatprep.subr.mxu0 0.0
    %53 = vmatpush1.msra.mxu0 %v32
    %54 = vmatprep.subr.mxu0 0.0
    %55 = vmatpush1.msra.mxu0 %v33
    %56 = vmatprep.subr.mxu0 0.0
    %57 = vmatpush1.msra.mxu0 %v34
    %58 = vmatprep.subr.mxu0 0.0
    %59 = vmatpush1.msra.mxu0 %v35
    %60 = vmatprep.subr.mxu0 0.0
    %61 = vmatpush1.msra.mxu0 %v36
    %62 = vmatprep.subr.mxu0 0.0
    %63 = vmatpush1.msra.mxu0 %v37
    %64 = vmatprep.subr.mxu0 0.0
    %65 = vmatpush1.msra.mxu0 %v38
    %66 = vmatprep.subr.mxu0 0.0
    %67 = vmatpush1.msra.mxu0 %v39
    %68 = vmatprep.subr.mxu0 0.0
    %69 = vmatpush1.msra.mxu0 %v40
    %70 = vmatprep.subr.mxu0 0.0
    %71 = vmatpush1.msra.mxu0 %v41
    %72 = vmatprep.subr.mxu0 0.0
    %73 = vmatpush1.msra.mxu0 %v42
    %74 = vmatprep.subr.mxu0 0.0
    %75 = vmatpush1.msra.mxu0 %v43
    %76 = vmatprep.subr.mxu0 0.0
    %77 = vmatpush1.msra.mxu0 0.0
    %78 = vmatprep.subr.mxu0 0.0
    %79 = vmatpush1.msra.mxu0 0.0
    %80 = vmatprep.subr.mxu0 0.0
    %81 = vmatpush1.msra.mxu0 0.0
    %82 = vmatprep.subr.mxu0 0.0
    %83 = vmatpush1.msra.mxu0 0.0
    %84 = vmatprep.subr.mxu0 0.0
    %85 = vmatpush1.msra.mxu0 0.0
    %86 = vmatprep.subr.mxu0 0.0
    %87 = vmatpush1.msra.mxu0 0.0
    %88 = vmatprep.subr.mxu0 0.0
    %89 = vmatpush1.msra.mxu0 0.0
    %90 = vmatprep.subr.mxu0 0.0
    %91 = vmatpush1.msra.mxu0 0.0
    %92 = vmatprep.subr.mxu0 0.0
    %93 = vmatpush1.msra.mxu0 0.0
    %94 = vmatprep.subr.mxu0 0.0
    %95 = vmatpush1.msra.mxu0 0.0
    %96 = vmatprep.subr.mxu0 0.0
    %97 = vmatpush1.msra.mxu0 0.0
    %98 = vmatprep.subr.mxu0 0.0
    %99 = vmatpush1.msra.mxu0 0.0
    %100 = vmatprep.subr.mxu0 0.0
    %101 = vmatpush1.msra.mxu0 0.0
    %102 = vmatprep.subr.mxu0 0.0
    %103 = vmatpush1.msra.mxu0 0.0
    %104 = vmatprep.subr.mxu0 0.0
    %105 = vmatpush1.msra.mxu0 0.0
    %106 = vmatprep.subr.mxu0 0.0
    %107 = vmatpush1.msra.mxu0 0.0
    %108 = vmatprep.mubr.f32.mxu0 0.0
    %109 = vmatmul.mubr.f32.gmra.mrb[0].mxu0 %v26
    %v110 = vpop.f32.mrb[0].mxu0
    %v111 = vadd.f32 0.0, %v110
    %v112 = vpop.f32.mrb[0].mxu0
    %113 = vmatprep.mubr.f32.mxu0 0.0
    %114 = vmatmul.mubr.f32.gmra.mrb[0].mxu0 %v27
    %v115 = vpop.f32.mrb[0].mxu0
    %v116 = vadd.f32 0.0, %v115
    %v117 = vpop.f32.mrb[0].mxu0
    %118 = vdwg.mxu0
    %vm119 = vcmask 261120
    %120 = vst.msk [vmem:[#allocation2] sm:$0xff] %vm119, %v111
    %121 = vst.msk [vmem:[#allocation2 + $0x8] sm:$0xff] %vm119, %v116
    // Predicated region
    $region10: #{tpu_custom_call.1} parent=1 // pred_check
      _
    $region11: #{tpu_custom_call.1} parent=1 // pred_check_branch
      %123 = sbr.rel (0) target = $region13
    $region12: #{tpu_custom_call.1} parent=1 // pred_region
      %s125 = ssub.s32 256, 256
      %126 = vsyncadd [#allocation3], %s125
      %s127 = sshll.u32 [#allocation2], 4
      %s128 = int_to_ptr.vmem [resolvable:$true] %s127
      %133 = dma.vmem_to_hbm [thread:$0]  %s128, 256, %s2, [#allocation3], 128, 128, 8
    $region13: #{tpu_custom_call.1} parent=1 // pred_fallthru
      _
    // Predicated region
    $region14: #{tpu_custom_call.1} parent=1 // pred_check
      _
    $region15: #{tpu_custom_call.1} parent=1 // pred_check_branch
      %135 = sbr.rel (0) target = $region17
    $region16: #{tpu_custom_call.1} parent=1 // pred_region
      %136 = dma.done [#allocation3], 256
    $region17: #{tpu_custom_call.1} parent=1 // pred_fallthru
      _
    %137 = vsyncpa [#allocation3], 1

</llo_original>
